<compile_context>
chip_gen: v7x
topology: tpu7x:2x2x1
jax: 0.10.0
libtpu: 0.0.40
codegen_flags: <defaults>
</compile_context>

<pallas_src>
import functools
import math

import jax
import jax.numpy as jnp
from jax.experimental import pallas as pl
from jax.experimental.pallas import tpu as pltpu

LANE = 128  # channel padding width carried between layers (lane-dense)


def _round_up(x, m):
    return (x + m - 1) // m * m


# ---------------------------------------------------------------------------
# Pallas kernels
# ---------------------------------------------------------------------------

def _conv_bn_relu_pool_kernel(a_ref, w_ref, scale_ref, shift_ref, o_ref, *, pool):
    """Fused Conv1d(+bias) -> BN(eval) -> ReLU -> MaxPool1d(pool) for one tile.

    a_ref:     (1, pool, tp, Kp)  bf16  im2col rows, grouped by pooling phase
    w_ref:     (Kp, Cop)          bf16  flattened conv weight (tap-major, 0-pad)
    scale_ref: (1, 1, Cop)        f32   gamma / sqrt(var + eps)
    shift_ref: (1, 1, Cop)        f32   beta + scale * (conv_bias - mean)
    o_ref:     (1, tp, Cop)       bf16  max-pooled output tile
    """
    w = w_ref[...]
    scale = scale_ref[0]
    shift = shift_ref[0]
    m = None
    for p in range(pool):  # static unroll: one MXU dot per pooling phase
        acc = jnp.dot(a_ref[0, p], w, preferred_element_type=jnp.float32)
        y = jnp.maximum(acc * scale + shift, 0.0)     # BN (eval) + ReLU
        m = y if m is None else jnp.maximum(m, y)     # running max == MaxPool1d
    o_ref[0] = m.astype(o_ref.dtype)


def _head_kernel(x_ref, w1_ref, b1_ref, w2_ref, b2_ref, logp_ref, emb_ref,
                 *, n_valid):
    """Global avg-pool + fc1 + log_softmax + embedding Linear + l2_norm."""
    x = x_ref[...].astype(jnp.float32)               # (Np, L, Cp)
    pooled = jnp.mean(x, axis=1)                     # avg_pool1d over full length
    z = jnp.dot(pooled, w1_ref[...],
                preferred_element_type=jnp.float32) + b1_ref[...]   # fc1 logits
    col = jax.lax.broadcasted_iota(jnp.int32, z.shape, 1)
    mask = col < n_valid                             # real class columns only
    zm = jnp.where(mask, z, -1e30)
    zmax = jnp.max(zm, axis=1, keepdims=True)
    ez = jnp.where(mask, jnp.exp(z - zmax), 0.0)
    lse = zmax + jnp.log(jnp.sum(ez, axis=1, keepdims=True))
    logp_ref[...] = z - lse                          # log_softmax(dim=1)
    ze = jnp.where(mask, z, 0.0)                     # embedding sees raw logits
    y = jnp.dot(ze, w2_ref[...],
                preferred_element_type=jnp.float32) + b2_ref[...]
    normp = jnp.sum(y * y, axis=1, keepdims=True) + 1e-12
    emb_ref[...] = y * jax.lax.rsqrt(normp)          # l2_norm via EUP rsqrt


# ---------------------------------------------------------------------------
# Pallas wrappers (glue: im2col, padding, tiling)
# ---------------------------------------------------------------------------

@functools.partial(jax.jit, static_argnames=("kernel_size", "stride", "pool"))
def conv1d_bn_relu_maxpool(x, w_p, scale, shift, *, kernel_size, stride, pool):
    """x: (N, Lin, C) bf16 channels-last (C already lane-padded for layers > 1).

    Returns (N, Lp, Cop) bf16 with Lp = ((Lin - kernel_size)//stride + 1) // pool.
    """
    N, Lin, C = x.shape
    Kp, Cop = w_p.shape
    Lo = (Lin - kernel_size) // stride + 1
    Lp = Lo // pool                                   # MaxPool1d drops remainder
    if Lp < 1:
        raise ValueError("input too short for this layer")
    T = Lp * pool
    # im2col glue: kernel_size strided time windows, tap-major / channel-minor,
    # regrouped by pooling phase so the kernel needs no in-VMEM reshape.
    taps = [x[:, dk: dk + stride * (T - 1) + 1: stride, :]
            for dk in range(kernel_size)]
    a = taps[0] if kernel_size == 1 else jnp.concatenate(taps, axis=-1)
    a = a.reshape(N, Lp, pool, kernel_size * C).transpose(0, 2, 1, 3)
    # tile the pooled-time axis -> VMEM bounded independent of sequence length
    tp = min(64, _round_up(Lp, 16))
    Lpp = _round_up(Lp, tp)
    a = jnp.pad(a, ((0, 0), (0, 0), (0, Lpp - Lp), (0, Kp - kernel_size * C)))
    a = a.astype(jnp.bfloat16)

    out = pl.pallas_call(
        functools.partial(_conv_bn_relu_pool_kernel, pool=pool),
        out_shape=jax.ShapeDtypeStruct((N, Lpp, Cop), jnp.bfloat16),
        grid_spec=pltpu.PrefetchScalarGridSpec(
            num_scalar_prefetch=0,
            grid=(N, Lpp // tp),
            in_specs=[
                pl.BlockSpec((1, pool, tp, Kp), lambda n, j: (n, 0, j, 0)),
                pl.BlockSpec((Kp, Cop), lambda n, j: (0, 0)),
                pl.BlockSpec((1, 1, Cop), lambda n, j: (0, 0, 0)),
                pl.BlockSpec((1, 1, Cop), lambda n, j: (0, 0, 0)),
            ],
            out_specs=pl.BlockSpec((1, tp, Cop), lambda n, j: (n, j, 0)),
        ),
        compiler_params=pltpu.CompilerParams(
            dimension_semantics=("parallel", "parallel")),
    )(a, w_p, scale, shift)
    return out[:, :Lp, :]


@functools.partial(jax.jit, static_argnames=("n_output", "embedding_size"))
def head_fc_logsoftmax_embed_l2(x, w1p, b1p, w2p, b2p, *, n_output,
                                embedding_size):
    """x: (N, L, Cp) bf16 -> (log_softmax logits (N, n_output), l2 embed)."""
    N = x.shape[0]
    Np = _round_up(N, 8)
    xp = jnp.pad(x, ((0, Np - N), (0, 0), (0, 0)))
    logp, emb = pl.pallas_call(
        functools.partial(_head_kernel, n_valid=n_output),
        out_shape=(jax.ShapeDtypeStruct((Np, w1p.shape[1]), jnp.float32),
                   jax.ShapeDtypeStruct((Np, w2p.shape[1]), jnp.float32)),
    )(xp, w1p, b1p, w2p, b2p)
    return logp[:N, :n_output], emb[:N, :embedding_size]


# ---------------------------------------------------------------------------
# Parameter initialization (deterministic, synthetic)
# ---------------------------------------------------------------------------

class _KeyGen:
    def __init__(self, key):
        self._key = key

    def __call__(self):
        self._key, sub = jax.random.split(self._key)
        return sub


def _conv_bn_params(kg, k, cin, cout, cin_pad, cout_pad=LANE, eps=1e-5):
    # Conv1d weight (k, cin, cout) + bias, BatchNorm1d eval-mode statistics.
    w = (1.0 / math.sqrt(k * cin)) * jax.random.normal(
        kg(), (k, cin, cout), dtype=jnp.float32)
    bias = 0.05 * jax.random.normal(kg(), (cout,), dtype=jnp.float32)
    gamma = 1.0 + 0.1 * jax.random.normal(kg(), (cout,), dtype=jnp.float32)
    beta = 0.1 * jax.random.normal(kg(), (cout,), dtype=jnp.float32)
    mean = 0.1 * jax.random.normal(kg(), (cout,), dtype=jnp.float32)
    var = jax.random.uniform(kg(), (cout,), dtype=jnp.float32,
                             minval=0.5, maxval=1.5)
    scale = gamma / jnp.sqrt(var + eps)
    shift = beta + scale * (bias - mean)          # conv bias folded into BN shift
    kp = _round_up(k * cin_pad, LANE)
    w_full = jnp.zeros((k, cin_pad, cout_pad), jnp.float32)
    w_full = w_full.at[:, :cin, :cout].set(w)
    w_p = w_full.reshape(k * cin_pad, cout_pad)
    w_p = jnp.pad(w_p, ((0, kp - w_p.shape[0]), (0, 0))).astype(jnp.bfloat16)
    scale_p = jnp.zeros((1, 1, cout_pad), jnp.float32).at[0, 0, :cout].set(scale)
    shift_p = jnp.zeros((1, 1, cout_pad), jnp.float32).at[0, 0, :cout].set(shift)
    return {"w": w_p, "scale": scale_p, "shift": shift_p}


def init_m5_params(key, n_input=1, n_output=35, stride=16, n_channel=32,
                   embedding_size=512):
    kg = _KeyGen(key)
    # (kernel_size, stride, Cin_real, Cin_as_stored_in_activation, Cout_real)
    cfg = [
        (80, stride, n_input, n_input, n_channel),        # conv1/bn1/pool1
        (3, 1, n_channel, LANE, n_channel),               # conv2/bn2/pool2
        (3, 1, n_channel, LANE, 2 * n_channel),           # conv3/bn3/pool3
        (3, 1, 2 * n_channel, LANE, 2 * n_channel),       # conv4/bn4/pool4
    ]
    convs = []
    for (k, s, cin, cin_pad, cout) in cfg:
        p = _conv_bn_params(kg, k, cin, cout, cin_pad, LANE)
        p["k"] = k
        p["stride"] = s
        convs.append(p)
    # fc1: Linear(2*n_channel, n_output)
    fin = 2 * n_channel
    w1 = (1.0 / math.sqrt(fin)) * jax.random.normal(
        kg(), (fin, n_output), dtype=jnp.float32)
    b1 = (1.0 / math.sqrt(fin)) * jax.random.normal(
        kg(), (n_output,), dtype=jnp.float32)
    c1 = _round_up(n_output, LANE)
    w1p = jnp.zeros((LANE, c1), jnp.float32).at[:fin, :n_output].set(w1)
    b1p = jnp.zeros((1, c1), jnp.float32).at[0, :n_output].set(b1)
    # embedding: Linear(n_output, embedding_size); kaiming_normal_(fan_out), bias 0
    ep = _round_up(embedding_size, LANE)
    std = math.sqrt(2.0 / embedding_size)
    w2 = std * jax.random.normal(kg(), (n_output, embedding_size),
                                 dtype=jnp.float32)
    w2p = jnp.zeros((c1, ep), jnp.float32).at[:n_output, :embedding_size].set(w2)
    b2p = jnp.zeros((1, ep), jnp.float32)
    return {"convs": convs, "fc1_w": w1p, "fc1_b": b1p,
            "emb_w": w2p, "emb_b": b2p,
            "n_output": n_output, "embedding_size": embedding_size}


# ---------------------------------------------------------------------------
# Forward pass  (matches M5.forward: returns (log_softmax(fc1), l2(embedding)))
# ---------------------------------------------------------------------------

def m5_forward(params, x_ncl):
    # layout: input (N, n_input=1, L) PyTorch NCL -> channels-last (N, L, C) bf16
    x = jnp.transpose(x_ncl, (0, 2, 1)).astype(jnp.bfloat16)
    for blk in params["convs"]:
        x = conv1d_bn_relu_maxpool(x, blk["w"], blk["scale"], blk["shift"],
                                   kernel_size=blk["k"], stride=blk["stride"],
                                   pool=4)
    logp, emb = head_fc_logsoftmax_embed_l2(
        x, params["fc1_w"], params["fc1_b"], params["emb_w"], params["emb_b"],
        n_output=params["n_output"], embedding_size=params["embedding_size"])
    return logp, emb


# ---------------------------------------------------------------------------

if __name__ == "__main__":
    key = jax.random.PRNGKey(0)
    pkey, xkey = jax.random.split(key)

    params = init_m5_params(pkey)
    # Smallest convenient audio length: conv1 (k=80, stride=16) plus four
    # MaxPool1d(4) stages require L >= 6848 for a non-empty final feature map.
    x = jax.random.normal(xkey, (2, 1, 8000), dtype=jnp.float32)

    logp, emb = m5_forward(params, x)
    logp = jax.block_until_ready(logp)
    emb = jax.block_until_ready(emb)

    assert logp.shape == (2, 35), logp.shape
    assert emb.shape == (2, 512), emb.shape
    assert bool(jnp.all(jnp.isfinite(logp)))
    assert bool(jnp.all(jnp.isfinite(emb)))
    prob_sums = jnp.sum(jnp.exp(logp), axis=1)
    assert bool(jnp.all(jnp.abs(prob_sums - 1.0) < 1e-3)), prob_sums  # log_softmax
    norms = jnp.sqrt(jnp.sum(emb * emb, axis=1))
    assert bool(jnp.all(jnp.abs(norms - 1.0) < 1e-3)), norms          # l2_norm
    print("KERNEL_OK")
</pallas_src>

<mosaic_0001>
module attributes {stable_mosaic.version = 11 : i64} {
  func.func @_conv_bn_relu_pool_kernel(%arg0: i32, %arg1: i32, %arg2: memref<1x4x64x128xbf16, #tpu.memory_space<vmem>>, %arg3: memref<128x128xbf16, #tpu.memory_space<vmem>>, %arg4: memref<1x1x128xf32, #tpu.memory_space<vmem>>, %arg5: memref<1x1x128xf32, #tpu.memory_space<vmem>>, %arg6: memref<1x64x128xbf16, #tpu.memory_space<vmem>>) attributes {dimension_semantics = [#tpu.dimension_semantics<parallel>, #tpu.dimension_semantics<parallel>], iteration_bounds = array<i64: 2, 2>, scalar_prefetch = 0 : i64, scratch_operands = 0 : i64, tpu.core_type = #tpu.core_type<tc>, window_params = [{transform_indices = @transform_0, window_bounds = array<i64: 1, 4, 64, 128>}, {pipeline_mode = #tpu.pipeline_mode<synchronous>, transform_indices = @transform_1, window_bounds = array<i64: 128, 128>}, {pipeline_mode = #tpu.pipeline_mode<synchronous>, transform_indices = @transform_2, window_bounds = array<i64: 1, 1, 128>}, {pipeline_mode = #tpu.pipeline_mode<synchronous>, transform_indices = @transform_3, window_bounds = array<i64: 1, 1, 128>}, {transform_indices = @transform_4, window_bounds = array<i64: 1, 64, 128>}]} {
    %c0 = arith.constant 0 : index
    %c0_0 = arith.constant 0 : index
    %0 = vector.load %arg3[%c0, %c0_0] : memref<128x128xbf16, #tpu.memory_space<vmem>>, vector<128x128xbf16>
    %c0_1 = arith.constant 0 : index
    %c0_2 = arith.constant 0 : index
    %c0_3 = arith.constant 0 : index
    %1 = vector.load %arg4[%c0_1, %c0_2, %c0_3] : memref<1x1x128xf32, #tpu.memory_space<vmem>>, vector<1x1x128xf32>
    %2 = vector.shape_cast %1 : vector<1x1x128xf32> to vector<1x128xf32>
    %c0_4 = arith.constant 0 : index
    %c0_5 = arith.constant 0 : index
    %c0_6 = arith.constant 0 : index
    %3 = vector.load %arg5[%c0_4, %c0_5, %c0_6] : memref<1x1x128xf32, #tpu.memory_space<vmem>>, vector<1x1x128xf32>
    %4 = vector.shape_cast %3 : vector<1x1x128xf32> to vector<1x128xf32>
    %c0_7 = arith.constant 0 : index
    %c0_8 = arith.constant 0 : index
    %c0_9 = arith.constant 0 : index
    %c0_10 = arith.constant 0 : index
    %5 = vector.load %arg2[%c0_7, %c0_8, %c0_9, %c0_10] : memref<1x4x64x128xbf16, #tpu.memory_space<vmem>>, vector<1x1x64x128xbf16>
    %6 = vector.shape_cast %5 : vector<1x1x64x128xbf16> to vector<64x128xbf16>
    %cst = arith.constant dense<0.000000e+00> : vector<64x128xf32>
    %7 = tpu.matmul %6, %0, %cst {dimension_numbers = #tpu.dot_dimension_numbers<[1], [0], [0], [1], [0, 0, 1, 1], [], []>} : vector<64x128xbf16>, vector<128x128xbf16>, vector<64x128xf32> -> vector<64x128xf32>
    %8 = vector.broadcast %2 : vector<1x128xf32> to vector<64x128xf32>
    %9 = arith.mulf %7, %8 : vector<64x128xf32>
    %10 = vector.broadcast %4 : vector<1x128xf32> to vector<64x128xf32>
    %11 = arith.addf %9, %10 : vector<64x128xf32>
    %cst_11 = arith.constant 0.000000e+00 : f32
    %12 = vector.broadcast %cst_11 : f32 to vector<64x128xf32>
    %13 = arith.maximumf %11, %12 : vector<64x128xf32>
    %c0_12 = arith.constant 0 : index
    %c1 = arith.constant 1 : index
    %c0_13 = arith.constant 0 : index
    %c0_14 = arith.constant 0 : index
    %14 = vector.load %arg2[%c0_12, %c1, %c0_13, %c0_14] : memref<1x4x64x128xbf16, #tpu.memory_space<vmem>>, vector<1x1x64x128xbf16>
    %15 = vector.shape_cast %14 : vector<1x1x64x128xbf16> to vector<64x128xbf16>
    %cst_15 = arith.constant dense<0.000000e+00> : vector<64x128xf32>
    %16 = tpu.matmul %15, %0, %cst_15 {dimension_numbers = #tpu.dot_dimension_numbers<[1], [0], [0], [1], [0, 0, 1, 1], [], []>} : vector<64x128xbf16>, vector<128x128xbf16>, vector<64x128xf32> -> vector<64x128xf32>
    %17 = vector.broadcast %2 : vector<1x128xf32> to vector<64x128xf32>
    %18 = arith.mulf %16, %17 : vector<64x128xf32>
    %19 = vector.broadcast %4 : vector<1x128xf32> to vector<64x128xf32>
    %20 = arith.addf %18, %19 : vector<64x128xf32>
    %cst_16 = arith.constant 0.000000e+00 : f32
    %21 = vector.broadcast %cst_16 : f32 to vector<64x128xf32>
    %22 = arith.maximumf %20, %21 : vector<64x128xf32>
    %23 = arith.maximumf %13, %22 : vector<64x128xf32>
    %c0_17 = arith.constant 0 : index
    %c2 = arith.constant 2 : index
    %c0_18 = arith.constant 0 : index
    %c0_19 = arith.constant 0 : index
    %24 = vector.load %arg2[%c0_17, %c2, %c0_18, %c0_19] : memref<1x4x64x128xbf16, #tpu.memory_space<vmem>>, vector<1x1x64x128xbf16>
    %25 = vector.shape_cast %24 : vector<1x1x64x128xbf16> to vector<64x128xbf16>
    %cst_20 = arith.constant dense<0.000000e+00> : vector<64x128xf32>
    %26 = tpu.matmul %25, %0, %cst_20 {dimension_numbers = #tpu.dot_dimension_numbers<[1], [0], [0], [1], [0, 0, 1, 1], [], []>} : vector<64x128xbf16>, vector<128x128xbf16>, vector<64x128xf32> -> vector<64x128xf32>
    %27 = vector.broadcast %2 : vector<1x128xf32> to vector<64x128xf32>
    %28 = arith.mulf %26, %27 : vector<64x128xf32>
    %29 = vector.broadcast %4 : vector<1x128xf32> to vector<64x128xf32>
    %30 = arith.addf %28, %29 : vector<64x128xf32>
    %cst_21 = arith.constant 0.000000e+00 : f32
    %31 = vector.broadcast %cst_21 : f32 to vector<64x128xf32>
    %32 = arith.maximumf %30, %31 : vector<64x128xf32>
    %33 = arith.maximumf %23, %32 : vector<64x128xf32>
    %c0_22 = arith.constant 0 : index
    %c3 = arith.constant 3 : index
    %c0_23 = arith.constant 0 : index
    %c0_24 = arith.constant 0 : index
    %34 = vector.load %arg2[%c0_22, %c3, %c0_23, %c0_24] : memref<1x4x64x128xbf16, #tpu.memory_space<vmem>>, vector<1x1x64x128xbf16>
    %35 = vector.shape_cast %34 : vector<1x1x64x128xbf16> to vector<64x128xbf16>
    %cst_25 = arith.constant dense<0.000000e+00> : vector<64x128xf32>
    %36 = tpu.matmul %35, %0, %cst_25 {dimension_numbers = #tpu.dot_dimension_numbers<[1], [0], [0], [1], [0, 0, 1, 1], [], []>} : vector<64x128xbf16>, vector<128x128xbf16>, vector<64x128xf32> -> vector<64x128xf32>
    %37 = vector.broadcast %2 : vector<1x128xf32> to vector<64x128xf32>
    %38 = arith.mulf %36, %37 : vector<64x128xf32>
    %39 = vector.broadcast %4 : vector<1x128xf32> to vector<64x128xf32>
    %40 = arith.addf %38, %39 : vector<64x128xf32>
    %cst_26 = arith.constant 0.000000e+00 : f32
    %41 = vector.broadcast %cst_26 : f32 to vector<64x128xf32>
    %42 = arith.maximumf %40, %41 : vector<64x128xf32>
    %43 = arith.maximumf %33, %42 : vector<64x128xf32>
    %44 = arith.truncf %43 : vector<64x128xf32> to vector<64x128xbf16>
    %c0_27 = arith.constant 0 : index
    %c0_28 = arith.constant 0 : index
    %c0_29 = arith.constant 0 : index
    %45 = vector.load %arg6[%c0_27, %c0_28, %c0_29] : memref<1x64x128xbf16, #tpu.memory_space<vmem>>, vector<1x64x128xbf16>
    %46 = vector.shape_cast %45 : vector<1x64x128xbf16> to vector<64x128xbf16>
    %47 = vector.shape_cast %44 : vector<64x128xbf16> to vector<1x64x128xbf16>
    tpu.vector_store %arg6[%c0_27, %c0_28, %c0_29], %47 {strides = array<i32>} : memref<1x64x128xbf16, #tpu.memory_space<vmem>>, vector<1x64x128xbf16>,
    return
  }
  func.func @transform_0(%arg0: i32, %arg1: i32) -> (i32, i32, i32, i32) {
    %c0_i32 = arith.constant 0 : i32
    %c0_i32_0 = arith.constant 0 : i32
    %c0_i32_1 = arith.constant 0 : i32
    return %arg0, %c0_i32, %arg1, %c0_i32_0 : i32, i32, i32, i32
  }
  func.func @transform_1(%arg0: i32, %arg1: i32) -> (i32, i32) {
    %c0_i32 = arith.constant 0 : i32
    %c0_i32_0 = arith.constant 0 : i32
    %c0_i32_1 = arith.constant 0 : i32
    return %c0_i32, %c0_i32_0 : i32, i32
  }
  func.func @transform_2(%arg0: i32, %arg1: i32) -> (i32, i32, i32) {
    %c0_i32 = arith.constant 0 : i32
    %c0_i32_0 = arith.constant 0 : i32
    %c0_i32_1 = arith.constant 0 : i32
    %c0_i32_2 = arith.constant 0 : i32
    return %c0_i32, %c0_i32_0, %c0_i32_1 : i32, i32, i32
  }
  func.func @transform_3(%arg0: i32, %arg1: i32) -> (i32, i32, i32) {
    %c0_i32 = arith.constant 0 : i32
    %c0_i32_0 = arith.constant 0 : i32
    %c0_i32_1 = arith.constant 0 : i32
    %c0_i32_2 = arith.constant 0 : i32
    return %c0_i32, %c0_i32_0, %c0_i32_1 : i32, i32, i32
  }
  func.func @transform_4(%arg0: i32, %arg1: i32) -> (i32, i32, i32) {
    %c0_i32 = arith.constant 0 : i32
    %c0_i32_0 = arith.constant 0 : i32
    return %arg0, %arg1, %c0_i32 : i32, i32, i32
  }
}

</mosaic_0001>

<llo_original>
// kernel: conv1d_bn_relu_maxpool.1
$region0: #{conv1d_bn_relu_maxpool.1}
  #allocation0 [shape = 'u32[]', space=smem, size = 0x4, offset = 0x4, fixed_abs, tag = 'smem constant byte address 0x4 - core index']
  #allocation1 [shape = 'u32[144,128]{1,0:T(1,128)}', space=vmem, size = 0x12000, scoped, tag = 'internal scratch']
  %s0 = inlined_call_operand.vmem [shape: bf16[2,4,128,128], index: 0, kind: input, shape index: {}]
  %s1 = inlined_call_operand.vmem [shape: bf16[128,128], index: 1, kind: input, shape index: {}]
  %s2 = inlined_call_operand.vmem [shape: f32[1,1,128], index: 2, kind: input, shape index: {}]
  %s3 = inlined_call_operand.vmem [shape: f32[1,1,128], index: 3, kind: input, shape index: {}]
  %s4 = inlined_call_operand.vmem [shape: bf16[2,128,128], index: 4, kind: output, shape index: {}]
  %s5 = sld [smem:[#allocation0]]
  $region90: #{conv1d_bn_relu_maxpool.1} parent=0
    _
  %s7 = ssub.s32 1, %s5
  %s8 = scalar_select 0, %s7, %s5
  $region1: #{conv1d_bn_relu_maxpool.1} parent=0
    #allocation2 [shape = 'u8[131072]{0}', space=vmem, size = 0x20000, scoped, tag = 'input window, operand 0']
    loop: start=0, step=1, limit=6
    $region2: #{conv1d_bn_relu_maxpool.1} parent=1 // loop_pre_header
      _
    $region3: #{conv1d_bn_relu_maxpool.1} parent=1 // loop_header
      %s10 = sphi 0, %s14
      %p11 = scmp.ge.s32.totalorder %s10, 6
      %s17 = sphi 0, %s29
      %s18 = sphi 0, %s25
      %s19 = sphi 0, %s17
      %s20 = sphi 0, %s18
      %s21 = sphi 0, %s19
      %s22 = sphi 0, %s20
      %s34 = sphi 0, %s36
      %s37 = sphi 0, %s34
      %s38 = sphi 0, %s37
      %s54 = sphi 0, %s38
      %s58 = sphi 0, %s58
      %s60 = sphi 0, %s58
      %s61 = sphi 0, %s60
      %s75 = sphi 0, %s61
      %s79 = sphi 0, %s79
      %s81 = sphi 0, %s79
      %s82 = sphi 0, %s81
      %s96 = sphi 0, %s82
      %s100 = sphi 0, %s100
      %s102 = sphi 0, %s100
      %s103 = sphi 0, %s102
      %s117 = sphi 0, %s103
      %s125 = sphi 0, %s127
      %s128 = sphi 0, %s125
      %s129 = sphi 0, %s128
      %s145 = sphi 0, %s129
    $region4: #{conv1d_bn_relu_maxpool.1} parent=1 // loop_header_branch
      %13 = sbr.rel (%p11) target = $region8
    $region5: #{conv1d_bn_relu_maxpool.1} parent=1 // loop_body
      %s15 = ssub.s32 %s10, 1
      %s16 = ssub.s32 %s10, 2
      %s23 = sadd.s32 1, %s18
      %p24 = scmp.ge.s32.totalorder %s23, 2
      %s25 = scalar_select %p24, 0, %s23
      %s26 = sadd.s32 1, %s17
      %s27 = scalar_select %p24, %s26, %s17
      %p28 = scmp.ge.s32.totalorder %s27, 2
      %s29 = scalar_select %p28, 0, %s27
      %s30 = ssub.s32 %s17, %s29
      %s31 = ssub.s32 %s18, %s25
      %s32 = sor.u32 %s30, %s31
      %p33 = scmp.eq.s32.totalorder %s32, 0
      %s35 = sadd.s32 %s34, 1
      %s36 = scalar_select %p33, %s34, %s35
      %p39 = pneg %p33
      %p40 = scmp.eq.s32.totalorder %s10, 3
      %p41 = por %p39, %p40
      %p42 = scmp.ne.s32.totalorder %s34, %s37
      %p43 = scmp.eq.s32.totalorder %s10, 0
      %p44 = por %p42, %p43
      %p45 = scmp.ne.s32.totalorder %s34, %s37
      %p46 = scmp.eq.s32.totalorder %s15, 3
      %p47 = por %p45, %p46
      %p48 = scmp.ne.s32.totalorder %s37, %s38
      %p49 = scmp.eq.s32.totalorder %s15, 0
      %p50 = por %p48, %p49
      %p51 = scmp.ne.s32.totalorder %s37, %s38
      %p52 = scmp.eq.s32.totalorder %s16, 3
      %p53 = por %p51, %p52
      %p55 = scmp.ne.s32.totalorder %s38, %s54
      %p56 = scmp.eq.s32.totalorder %s16, 0
      %p57 = por %p55, %p56
      %s59 = sadd.s32 %s58, 1
      %p62 = scmp.eq.s32.totalorder %s10, 3
      %p63 = scmp.ne.s32.totalorder %s58, %s60
      %p64 = scmp.eq.s32.totalorder %s10, 0
      %p65 = por %p63, %p64
      %p66 = scmp.ne.s32.totalorder %s58, %s60
      %p67 = scmp.eq.s32.totalorder %s15, 3
      %p68 = por %p66, %p67
      %p69 = scmp.ne.s32.totalorder %s60, %s61
      %p70 = scmp.eq.s32.totalorder %s15, 0
      %p71 = por %p69, %p70
      %p72 = scmp.ne.s32.totalorder %s60, %s61
      %p73 = scmp.eq.s32.totalorder %s16, 3
      %p74 = por %p72, %p73
      %p76 = scmp.ne.s32.totalorder %s61, %s75
      %p77 = scmp.eq.s32.totalorder %s16, 0
      %p78 = por %p76, %p77
      %s80 = sadd.s32 %s79, 1
      %p83 = scmp.eq.s32.totalorder %s10, 3
      %p84 = scmp.ne.s32.totalorder %s79, %s81
      %p85 = scmp.eq.s32.totalorder %s10, 0
      %p86 = por %p84, %p85
      %p87 = scmp.ne.s32.totalorder %s79, %s81
      %p88 = scmp.eq.s32.totalorder %s15, 3
      %p89 = por %p87, %p88
      %p90 = scmp.ne.s32.totalorder %s81, %s82
      %p91 = scmp.eq.s32.totalorder %s15, 0
      %p92 = por %p90, %p91
      %p93 = scmp.ne.s32.totalorder %s81, %s82
      %p94 = scmp.eq.s32.totalorder %s16, 3
      %p95 = por %p93, %p94
      %p97 = scmp.ne.s32.totalorder %s82, %s96
      %p98 = scmp.eq.s32.totalorder %s16, 0
      %p99 = por %p97, %p98
      %s101 = sadd.s32 %s100, 1
      %p104 = scmp.eq.s32.totalorder %s10, 3
      %p105 = scmp.ne.s32.totalorder %s100, %s102
      %p106 = scmp.eq.s32.totalorder %s10, 0
      %p107 = por %p105, %p106
      %p108 = scmp.ne.s32.totalorder %s100, %s102
      %p109 = scmp.eq.s32.totalorder %s15, 3
      %p110 = por %p108, %p109
      %p111 = scmp.ne.s32.totalorder %s102, %s103
      %p112 = scmp.eq.s32.totalorder %s15, 0
      %p113 = por %p111, %p112
      %p114 = scmp.ne.s32.totalorder %s102, %s103
      %p115 = scmp.eq.s32.totalorder %s16, 3
      %p116 = por %p114, %p115
      %p118 = scmp.ne.s32.totalorder %s103, %s117
      %p119 = scmp.eq.s32.totalorder %s16, 0
      %p120 = por %p118, %p119
      %s121 = ssub.s32 %s17, %s29
      %s122 = ssub.s32 %s18, %s25
      %s123 = sor.u32 %s121, %s122
      %p124 = scmp.eq.s32.totalorder %s123, 0
      %s126 = sadd.s32 %s125, 1
      %s127 = scalar_select %p124, %s125, %s126
      %p130 = pneg %p124
      %p131 = scmp.eq.s32.totalorder %s10, 3
      %p132 = por %p130, %p131
      %p133 = scmp.ne.s32.totalorder %s125, %s128
      %p134 = scmp.eq.s32.totalorder %s10, 0
      %p135 = por %p133, %p134
      %p136 = scmp.ne.s32.totalorder %s125, %s128
      %p137 = scmp.eq.s32.totalorder %s15, 3
      %p138 = por %p136, %p137
      %p139 = scmp.ne.s32.totalorder %s128, %s129
      %p140 = scmp.eq.s32.totalorder %s15, 0
      %p141 = por %p139, %p140
      %p142 = scmp.ne.s32.totalorder %s128, %s129
      %p143 = scmp.eq.s32.totalorder %s16, 3
      %p144 = por %p142, %p143
      %p146 = scmp.ne.s32.totalorder %s129, %s145
      %p147 = scmp.eq.s32.totalorder %s16, 0
      %p148 = por %p146, %p147
      %p149 = scmp.le.s32.totalorder 1, %s10
      %p150 = scmp.lt.s32.totalorder %s10, 5
      %p151 = pnand %p149, %p150
      %p152 = pneg %p151
      // Predicated region
      $region9: #{conv1d_bn_relu_maxpool.1} parent=5 // pred_check
        _
      $region10: #{conv1d_bn_relu_maxpool.1} parent=5 // pred_check_branch
        %154 = sbr.rel (%p151) target = $region12
      $region11: #{conv1d_bn_relu_maxpool.1} parent=5 // pred_region
        %s155 = ssub.s32 %s10, 1
        // Predicated region
        $region13: #{conv1d_bn_relu_maxpool.1} parent=11 // pred_check
          %p156 = pneg %p71
        $region14: #{conv1d_bn_relu_maxpool.1} parent=11 // pred_check_branch
          %158 = sbr.rel (%p156) target = $region16
        $region15: #{conv1d_bn_relu_maxpool.1} parent=11 // pred_region
          _
        $region16: #{conv1d_bn_relu_maxpool.1} parent=11 // pred_fallthru
          _
        // Predicated region
        $region17: #{conv1d_bn_relu_maxpool.1} parent=11 // pred_check
          %p159 = pneg %p92
        $region18: #{conv1d_bn_relu_maxpool.1} parent=11 // pred_check_branch
          %161 = sbr.rel (%p159) target = $region20
        $region19: #{conv1d_bn_relu_maxpool.1} parent=11 // pred_region
          _
        $region20: #{conv1d_bn_relu_maxpool.1} parent=11 // pred_fallthru
          _
        // Predicated region
        $region21: #{conv1d_bn_relu_maxpool.1} parent=11 // pred_check
          %p162 = pneg %p113
        $region22: #{conv1d_bn_relu_maxpool.1} parent=11 // pred_check_branch
          %164 = sbr.rel (%p162) target = $region24
        $region23: #{conv1d_bn_relu_maxpool.1} parent=11 // pred_region
          _
        $region24: #{conv1d_bn_relu_maxpool.1} parent=11 // pred_fallthru
          _
      $region12: #{conv1d_bn_relu_maxpool.1} parent=5 // pred_fallthru
        _
      %p165 = scmp.lt.s32.totalorder %s10, 4
      // Predicated region
      $region25: #{conv1d_bn_relu_maxpool.1} parent=5 // pred_check
        %p166 = pneg %p165
      $region26: #{conv1d_bn_relu_maxpool.1} parent=5 // pred_check_branch
        %168 = sbr.rel (%p166) target = $region28
      $region27: #{conv1d_bn_relu_maxpool.1} parent=5 // pred_region
        // Predicated region
        $region29: #{conv1d_bn_relu_maxpool.1} parent=27 // pred_check
          %p169 = pneg %p44
        $region30: #{conv1d_bn_relu_maxpool.1} parent=27 // pred_check_branch
          %171 = sbr.rel (%p169) target = $region32
        $region31: #{conv1d_bn_relu_maxpool.1} parent=27 // pred_region
          %s172 = sand.u32 %s34, 1
          %s173 = sand.u32 %s34, 1
          %s174 = smul.addr %s173, 128
          %s175 = scalar_lea.vmem [#allocation2], %s174
          %s176 = smul.u32 8, %s18
          %s177 = smul.addr %s17, 64
          %s178 = sadd.s32 %s176, %s177
          %s179 = smul.addr %s178, 4
          %s180 = scalar_lea.vmem %s0, %s179
          // Predicated region
          $region33: #{conv1d_bn_relu_maxpool.1} parent=31 // pred_check
            _
          $region34: #{conv1d_bn_relu_maxpool.1} parent=31 // pred_check_branch
            %182 = sbr.rel (0) target = $region36
          $region35: #{conv1d_bn_relu_maxpool.1} parent=31 // pred_region
            // Predicated region
            $region37: #{conv1d_bn_relu_maxpool.1} parent=35 // pred_check
              _
            $region38: #{conv1d_bn_relu_maxpool.1} parent=35 // pred_check_branch
              %184 = sbr.rel target = $region40
            $region39: #{conv1d_bn_relu_maxpool.1} parent=35 // pred_region
              // Predicated region
              $region52: #{conv1d_bn_relu_maxpool.1} parent=39 // pred_check
                _
              $region53: #{conv1d_bn_relu_maxpool.1} parent=39 // pred_check_branch
                %261 = sbr.rel (0) target = $region55
              $region54: #{conv1d_bn_relu_maxpool.1} parent=39 // pred_region
                loop: start=0, step=1, limit=1
                $region56: #{conv1d_bn_relu_maxpool.1} parent=54 // loop_pre_header
                  _
                $region57: #{conv1d_bn_relu_maxpool.1} parent=54 // loop_header
                  %s263 = sphi 0, %s267
                  %p264 = scmp.ge.s32.totalorder %s263, 1
                  %s268 = sphi %s180, %s180
                  %s269 = sphi %s175, %s175
                $region58: #{conv1d_bn_relu_maxpool.1} parent=54 // loop_header_branch
                  %266 = sbr.rel (%p264) target = $region62
                $region59: #{conv1d_bn_relu_maxpool.1} parent=54 // loop_body
                  _
                $region60: #{conv1d_bn_relu_maxpool.1} parent=54 // loop_footer
                  %s267 = sadd.s32 1, %s263
                $region61: #{conv1d_bn_relu_maxpool.1} parent=54 // loop_footer_branch
                  %262 = sbr.rel target = $region57
                $region62: #{conv1d_bn_relu_maxpool.1} parent=54 // loop_exit
                  _
                loop: start=0, step=1, limit=1
                $region63: #{conv1d_bn_relu_maxpool.1} parent=54 // loop_pre_header
                  _
                $region64: #{conv1d_bn_relu_maxpool.1} parent=54 // loop_header
                  %s272 = sphi 0, %s276
                  %p273 = scmp.ge.s32.totalorder %s272, 1
                  %s277 = sphi %s180, %s180
                  %s278 = sphi %s175, %s175
                $region65: #{conv1d_bn_relu_maxpool.1} parent=54 // loop_header_branch
                  %275 = sbr.rel (%p273) target = $region69
                $region66: #{conv1d_bn_relu_maxpool.1} parent=54 // loop_body
                  %v279 = vld [vmem:[%s277] sm:$0xf]
                  %280 = vst [vmem:[%s278] sm:$0xf] %v279
                  %v281 = vld [vmem:[%s277 + $0x4] sm:$0xf]
                  %282 = vst [vmem:[%s278 + $0x4] sm:$0xf] %v281
                  %v283 = vld [vmem:[%s277 + $0x8] sm:$0xf]
                  %284 = vst [vmem:[%s278 + $0x8] sm:$0xf] %v283
                  %v285 = vld [vmem:[%s277 + $0xc] sm:$0xf]
                  %286 = vst [vmem:[%s278 + $0xc] sm:$0xf] %v285
                  %v287 = vld [vmem:[%s277 + $0x10] sm:$0xf]
                  %288 = vst [vmem:[%s278 + $0x10] sm:$0xf] %v287
                  %v289 = vld [vmem:[%s277 + $0x14] sm:$0xf]
                  %290 = vst [vmem:[%s278 + $0x14] sm:$0xf] %v289
                  %v291 = vld [vmem:[%s277 + $0x18] sm:$0xf]
                  %292 = vst [vmem:[%s278 + $0x18] sm:$0xf] %v291
                  %v293 = vld [vmem:[%s277 + $0x1c] sm:$0xf]
                  %294 = vst [vmem:[%s278 + $0x1c] sm:$0xf] %v293
                  %v295 = vld [vmem:[%s277 + $0x40] sm:$0xf]
                  %296 = vst [vmem:[%s278 + $0x20] sm:$0xf] %v295
                  %v297 = vld [vmem:[%s277 + $0x44] sm:$0xf]
                  %298 = vst [vmem:[%s278 + $0x24] sm:$0xf] %v297
                  %v299 = vld [vmem:[%s277 + $0x48] sm:$0xf]
                  %300 = vst [vmem:[%s278 + $0x28] sm:$0xf] %v299
                  %v301 = vld [vmem:[%s277 + $0x4c] sm:$0xf]
                  %302 = vst [vmem:[%s278 + $0x2c] sm:$0xf] %v301
                  %v303 = vld [vmem:[%s277 + $0x50] sm:$0xf]
                  %304 = vst [vmem:[%s278 + $0x30] sm:$0xf] %v303
                  %v305 = vld [vmem:[%s277 + $0x54] sm:$0xf]
                  %306 = vst [vmem:[%s278 + $0x34] sm:$0xf] %v305
                  %v307 = vld [vmem:[%s277 + $0x58] sm:$0xf]
                  %308 = vst [vmem:[%s278 + $0x38] sm:$0xf] %v307
                  %v309 = vld [vmem:[%s277 + $0x5c] sm:$0xf]
                  %310 = vst [vmem:[%s278 + $0x3c] sm:$0xf] %v309
                  %v311 = vld [vmem:[%s277 + $0x80] sm:$0xf]
                  %312 = vst [vmem:[%s278 + $0x40] sm:$0xf] %v311
                  %v313 = vld [vmem:[%s277 + $0x84] sm:$0xf]
                  %314 = vst [vmem:[%s278 + $0x44] sm:$0xf] %v313
                  %v315 = vld [vmem:[%s277 + $0x88] sm:$0xf]
                  %316 = vst [vmem:[%s278 + $0x48] sm:$0xf] %v315
                  %v317 = vld [vmem:[%s277 + $0x8c] sm:$0xf]
                  %318 = vst [vmem:[%s278 + $0x4c] sm:$0xf] %v317
                  %v319 = vld [vmem:[%s277 + $0x90] sm:$0xf]
                  %320 = vst [vmem:[%s278 + $0x50] sm:$0xf] %v319
                  %v321 = vld [vmem:[%s277 + $0x94] sm:$0xf]
                  %322 = vst [vmem:[%s278 + $0x54] sm:$0xf] %v321
                  %v323 = vld [vmem:[%s277 + $0x98] sm:$0xf]
                  %324 = vst [vmem:[%s278 + $0x58] sm:$0xf] %v323
                  %v325 = vld [vmem:[%s277 + $0x9c] sm:$0xf]
                  %326 = vst [vmem:[%s278 + $0x5c] sm:$0xf] %v325
                  %v327 = vld [vmem:[%s277 + $0xc0] sm:$0xf]
                  %328 = vst [vmem:[%s278 + $0x60] sm:$0xf] %v327
                  %v329 = vld [vmem:[%s277 + $0xc4] sm:$0xf]
                  %330 = vst [vmem:[%s278 + $0x64] sm:$0xf] %v329
                  %v331 = vld [vmem:[%s277 + $0xc8] sm:$0xf]
                  %332 = vst [vmem:[%s278 + $0x68] sm:$0xf] %v331
                  %v333 = vld [vmem:[%s277 + $0xcc] sm:$0xf]
                  %334 = vst [vmem:[%s278 + $0x6c] sm:$0xf] %v333
                  %v335 = vld [vmem:[%s277 + $0xd0] sm:$0xf]
                  %336 = vst [vmem:[%s278 + $0x70] sm:$0xf] %v335
                  %v337 = vld [vmem:[%s277 + $0xd4] sm:$0xf]
                  %338 = vst [vmem:[%s278 + $0x74] sm:$0xf] %v337
                  %v339 = vld [vmem:[%s277 + $0xd8] sm:$0xf]
                  %340 = vst [vmem:[%s278 + $0x78] sm:$0xf] %v339
                  %v341 = vld [vmem:[%s277 + $0xdc] sm:$0xf]
                  %342 = vst [vmem:[%s278 + $0x7c] sm:$0xf] %v341
                $region67: #{conv1d_bn_relu_maxpool.1} parent=54 // loop_footer
                  %s276 = sadd.s32 1, %s272
                $region68: #{conv1d_bn_relu_maxpool.1} parent=54 // loop_footer_branch
                  %271 = sbr.rel target = $region64
                $region69: #{conv1d_bn_relu_maxpool.1} parent=54 // loop_exit
                  _
              $region55: #{conv1d_bn_relu_maxpool.1} parent=39 // pred_fallthru
                _
            $region40: #{conv1d_bn_relu_maxpool.1} parent=35 // pred_fallthru
              _
            // Predicated region
            $region41: #{conv1d_bn_relu_maxpool.1} parent=35 // pred_check
              _
            $region42: #{conv1d_bn_relu_maxpool.1} parent=35 // pred_check_branch
              %186 = sbr.rel (0) target = $region44
            $region43: #{conv1d_bn_relu_maxpool.1} parent=35 // pred_region
              loop: start=0, step=1, limit=1
              $region45: #{conv1d_bn_relu_maxpool.1} parent=43 // loop_pre_header
                _
              $region46: #{conv1d_bn_relu_maxpool.1} parent=43 // loop_header
                %s189 = sphi 0, %s193
                %p190 = scmp.ge.s32.totalorder %s189, 1
                %s194 = sphi %s180, %s180
                %s195 = sphi %s175, %s175
              $region47: #{conv1d_bn_relu_maxpool.1} parent=43 // loop_header_branch
                %192 = sbr.rel (%p190) target = $region51
              $region48: #{conv1d_bn_relu_maxpool.1} parent=43 // loop_body
                %v196 = vld [vmem:[%s194] sm:$0xf]
                %197 = vst [vmem:[%s195] sm:$0xf] %v196
                %v198 = vld [vmem:[%s194 + $0x4] sm:$0xf]
                %199 = vst [vmem:[%s195 + $0x4] sm:$0xf] %v198
                %v200 = vld [vmem:[%s194 + $0x8] sm:$0xf]
                %201 = vst [vmem:[%s195 + $0x8] sm:$0xf] %v200
                %v202 = vld [vmem:[%s194 + $0xc] sm:$0xf]
                %203 = vst [vmem:[%s195 + $0xc] sm:$0xf] %v202
                %v204 = vld [vmem:[%s194 + $0x10] sm:$0xf]
                %205 = vst [vmem:[%s195 + $0x10] sm:$0xf] %v204
                %v206 = vld [vmem:[%s194 + $0x14] sm:$0xf]
                %207 = vst [vmem:[%s195 + $0x14] sm:$0xf] %v206
                %v208 = vld [vmem:[%s194 + $0x18] sm:$0xf]
                %209 = vst [vmem:[%s195 + $0x18] sm:$0xf] %v208
                %v210 = vld [vmem:[%s194 + $0x1c] sm:$0xf]
                %211 = vst [vmem:[%s195 + $0x1c] sm:$0xf] %v210
                %v212 = vld [vmem:[%s194 + $0x40] sm:$0xf]
                %213 = vst [vmem:[%s195 + $0x20] sm:$0xf] %v212
                %v214 = vld [vmem:[%s194 + $0x44] sm:$0xf]
                %215 = vst [vmem:[%s195 + $0x24] sm:$0xf] %v214
                %v216 = vld [vmem:[%s194 + $0x48] sm:$0xf]
                %217 = vst [vmem:[%s195 + $0x28] sm:$0xf] %v216
                %v218 = vld [vmem:[%s194 + $0x4c] sm:$0xf]
                %219 = vst [vmem:[%s195 + $0x2c] sm:$0xf] %v218
                %v220 = vld [vmem:[%s194 + $0x50] sm:$0xf]
                %221 = vst [vmem:[%s195 + $0x30] sm:$0xf] %v220
                %v222 = vld [vmem:[%s194 + $0x54] sm:$0xf]
                %223 = vst [vmem:[%s195 + $0x34] sm:$0xf] %v222
                %v224 = vld [vmem:[%s194 + $0x58] sm:$0xf]
                %225 = vst [vmem:[%s195 + $0x38] sm:$0xf] %v224
                %v226 = vld [vmem:[%s194 + $0x5c] sm:$0xf]
                %227 = vst [vmem:[%s195 + $0x3c] sm:$0xf] %v226
                %v228 = vld [vmem:[%s194 + $0x80] sm:$0xf]
                %229 = vst [vmem:[%s195 + $0x40] sm:$0xf] %v228
                %v230 = vld [vmem:[%s194 + $0x84] sm:$0xf]
                %231 = vst [vmem:[%s195 + $0x44] sm:$0xf] %v230
                %v232 = vld [vmem:[%s194 + $0x88] sm:$0xf]
                %233 = vst [vmem:[%s195 + $0x48] sm:$0xf] %v232
                %v234 = vld [vmem:[%s194 + $0x8c] sm:$0xf]
                %235 = vst [vmem:[%s195 + $0x4c] sm:$0xf] %v234
                %v236 = vld [vmem:[%s194 + $0x90] sm:$0xf]
                %237 = vst [vmem:[%s195 + $0x50] sm:$0xf] %v236
                %v238 = vld [vmem:[%s194 + $0x94] sm:$0xf]
                %239 = vst [vmem:[%s195 + $0x54] sm:$0xf] %v238
                %v240 = vld [vmem:[%s194 + $0x98] sm:$0xf]
                %241 = vst [vmem:[%s195 + $0x58] sm:$0xf] %v240
                %v242 = vld [vmem:[%s194 + $0x9c] sm:$0xf]
                %243 = vst [vmem:[%s195 + $0x5c] sm:$0xf] %v242
                %v244 = vld [vmem:[%s194 + $0xc0] sm:$0xf]
                %245 = vst [vmem:[%s195 + $0x60] sm:$0xf] %v244
                %v246 = vld [vmem:[%s194 + $0xc4] sm:$0xf]
                %247 = vst [vmem:[%s195 + $0x64] sm:$0xf] %v246
                %v248 = vld [vmem:[%s194 + $0xc8] sm:$0xf]
                %249 = vst [vmem:[%s195 + $0x68] sm:$0xf] %v248
                %v250 = vld [vmem:[%s194 + $0xcc] sm:$0xf]
                %251 = vst [vmem:[%s195 + $0x6c] sm:$0xf] %v250
                %v252 = vld [vmem:[%s194 + $0xd0] sm:$0xf]
                %253 = vst [vmem:[%s195 + $0x70] sm:$0xf] %v252
                %v254 = vld [vmem:[%s194 + $0xd4] sm:$0xf]
                %255 = vst [vmem:[%s195 + $0x74] sm:$0xf] %v254
                %v256 = vld [vmem:[%s194 + $0xd8] sm:$0xf]
                %257 = vst [vmem:[%s195 + $0x78] sm:$0xf] %v256
                %v258 = vld [vmem:[%s194 + $0xdc] sm:$0xf]
                %259 = vst [vmem:[%s195 + $0x7c] sm:$0xf] %v258
              $region49: #{conv1d_bn_relu_maxpool.1} parent=43 // loop_footer
                %s193 = sadd.s32 1, %s189
              $region50: #{conv1d_bn_relu_maxpool.1} parent=43 // loop_footer_branch
                %188 = sbr.rel target = $region46
              $region51: #{conv1d_bn_relu_maxpool.1} parent=43 // loop_exit
                _
            $region44: #{conv1d_bn_relu_maxpool.1} parent=35 // pred_fallthru
              _
          $region36: #{conv1d_bn_relu_maxpool.1} parent=31 // pred_fallthru
            _
          %343 = vnop
        $region32: #{conv1d_bn_relu_maxpool.1} parent=27 // pred_fallthru
          _
      $region28: #{conv1d_bn_relu_maxpool.1} parent=5 // pred_fallthru
        _
      %p344 = scmp.le.s32.totalorder 1, %s10
      %p345 = scmp.lt.s32.totalorder %s10, 5
      %p346 = pnand %p344, %p345
      %p347 = pneg %p346
      // Predicated region
      $region70: #{conv1d_bn_relu_maxpool.1} parent=5 // pred_check
        _
      $region71: #{conv1d_bn_relu_maxpool.1} parent=5 // pred_check_branch
        %349 = sbr.rel (%p346) target = $region73
      $region72: #{conv1d_bn_relu_maxpool.1} parent=5 // pred_region
        %s350 = ssub.s32 %s10, 1
        %s351 = sand.u32 %s37, 1
        %s352 = sand.u32 %s37, 1
        %s353 = smul.addr %s352, 128
        %s354 = scalar_lea.vmem [#allocation2], %s353
        // Predicated region
        $region74: #{conv1d_bn_relu_maxpool.1} parent=72 // pred_check
          %p355 = pneg %p50
        $region75: #{conv1d_bn_relu_maxpool.1} parent=72 // pred_check_branch
          %357 = sbr.rel (%p355) target = $region77
        $region76: #{conv1d_bn_relu_maxpool.1} parent=72 // pred_region
          _
        $region77: #{conv1d_bn_relu_maxpool.1} parent=72 // pred_fallthru
          _
        %s358 = sand.u32 %s37, 1
        %s359 = sand.u32 %s37, 1
        %s360 = smul.addr %s359, 128
        %s361 = scalar_lea.vmem [#allocation2], %s360
        %p362 = pneg %p50
        %p363 = pneg %p47
        %p364 = pneg %p71
        %p365 = pneg %p68
        %p366 = pneg %p92
        %p367 = pneg %p89
        %p368 = pneg %p113
        %p369 = pneg %p110
        %p370 = pneg %p141
        %p371 = pneg %p138
        %s372 = smul.u32 8, %s20
        %p373 = scmp.lt.s32.totalorder %s19, 1
        %s374 = scalar_select %p373, %s19, 1
        %p375 = scmp.lt.s32.totalorder %s372, 15
        %s376 = scalar_select %p375, %s372, 15
        %s377 = smul.addr %s374, 16
        %s378 = sadd.s32 %s376, %s377
        %s379 = smul.addr %s378, 4
        %s380 = scalar_lea.vmem %s4, %s379
        %s381 = smul.u32 8, %s20
        %s382 = smul.u32 8, %s20
        %p383 = scmp.lt.s32.totalorder %s19, 1
        %s384 = scalar_select %p383, %s19, 1
        %p385 = scmp.lt.s32.totalorder %s382, 15
        %s386 = scalar_select %p385, %s382, 15
        %s387 = smul.addr %s384, 16
        %s388 = sadd.s32 %s386, %s387
        %s389 = smul.addr %s388, 4
        %s390 = scalar_lea.vmem %s4, %s389
        %s391 = smul.u32 8, %s20
        %v393 = vld [vmem:[%s1] sm:$0xf]
        %v394 = vld [vmem:[%s1 + $0x4] sm:$0xf]
        %v395 = vld [vmem:[%s1 + $0x8] sm:$0xf]
        %v396 = vld [vmem:[%s1 + $0xc] sm:$0xf]
        %v397 = vld [vmem:[%s1 + $0x10] sm:$0xf]
        %v398 = vld [vmem:[%s1 + $0x14] sm:$0xf]
        %v399 = vld [vmem:[%s1 + $0x18] sm:$0xf]
        %v400 = vld [vmem:[%s1 + $0x1c] sm:$0xf]
        %v401 = vld [vmem:[%s1 + $0x20] sm:$0xf]
        %v402 = vld [vmem:[%s1 + $0x24] sm:$0xf]
        %v403 = vld [vmem:[%s1 + $0x28] sm:$0xf]
        %v404 = vld [vmem:[%s1 + $0x2c] sm:$0xf]
        %v405 = vld [vmem:[%s1 + $0x30] sm:$0xf]
        %v406 = vld [vmem:[%s1 + $0x34] sm:$0xf]
        %v407 = vld [vmem:[%s1 + $0x38] sm:$0xf]
        %v408 = vld [vmem:[%s1 + $0x3c] sm:$0xf]
        %v409 = vld [vmem:[%s2] sm:$0x1]
        %v410 = vld [vmem:[%s3] sm:$0x1]
        %v411 = vld [vmem:[%s354] sm:$0xf]
        %v412 = vld [vmem:[%s354 + $0x4] sm:$0xf]
        %v413 = vld [vmem:[%s354 + $0x8] sm:$0xf]
        %v414 = vld [vmem:[%s354 + $0xc] sm:$0xf]
        %v415 = vld [vmem:[%s354 + $0x10] sm:$0xf]
        %v416 = vld [vmem:[%s354 + $0x14] sm:$0xf]
        %v417 = vld [vmem:[%s354 + $0x18] sm:$0xf]
        %v418 = vld [vmem:[%s354 + $0x1c] sm:$0xf]
        %v427 = vunpack.c.l.b16 %v411
        %v428 = vunpack.c.l.b16 %v412
        %v429 = vunpack.c.l.b16 %v413
        %v430 = vunpack.c.l.b16 %v414
        %v431 = vunpack.c.l.b16 %v415
        %v432 = vunpack.c.l.b16 %v416
        %v433 = vunpack.c.l.b16 %v417
        %v434 = vunpack.c.l.b16 %v418
        %v435 = vpack.c.b16 %v428, %v427
        %v436 = vpack.c.b16 %v430, %v429
        %v437 = vpack.c.b16 %v432, %v431
        %v438 = vpack.c.b16 %v434, %v433
        %v459 = vunpack.c.l.b16 %v393
        %v460 = vunpack.c.l.b16 %v394
        %v461 = vunpack.c.l.b16 %v395
        %v462 = vunpack.c.l.b16 %v396
        %v463 = vunpack.c.l.b16 %v397
        %v464 = vunpack.c.l.b16 %v398
        %v465 = vunpack.c.l.b16 %v399
        %v466 = vunpack.c.l.b16 %v400
        %v467 = vunpack.c.l.b16 %v401
        %v468 = vunpack.c.l.b16 %v402
        %v469 = vunpack.c.l.b16 %v403
        %v470 = vunpack.c.l.b16 %v404
        %v471 = vunpack.c.l.b16 %v405
        %v472 = vunpack.c.l.b16 %v406
        %v473 = vunpack.c.l.b16 %v407
        %v474 = vunpack.c.l.b16 %v408
        %v475 = vpack.c.b16 %v460, %v459
        %v476 = vpack.c.b16 %v462, %v461
        %v477 = vpack.c.b16 %v464, %v463
        %v478 = vpack.c.b16 %v466, %v465
        %v479 = vpack.c.b16 %v468, %v467
        %v480 = vpack.c.b16 %v470, %v469
        %v481 = vpack.c.b16 %v472, %v471
        %v482 = vpack.c.b16 %v474, %v473
        %491 = vmatprep.subr.bf16.mxu0 0
        %492 = vmatpush1.bf16.msra.mxu0 %v475
        %493 = vmatprep.subr.bf16.mxu0 0
        %494 = vmatpush1.bf16.msra.mxu0 %v476
        %495 = vmatprep.subr.bf16.mxu0 0
        %496 = vmatpush1.bf16.msra.mxu0 %v477
        %497 = vmatprep.subr.bf16.mxu0 0
        %498 = vmatpush1.bf16.msra.mxu0 %v478
        %499 = vmatprep.subr.bf16.mxu0 0
        %500 = vmatpush1.bf16.msra.mxu0 %v479
        %501 = vmatprep.subr.bf16.mxu0 0
        %502 = vmatpush1.bf16.msra.mxu0 %v480
        %503 = vmatprep.subr.bf16.mxu0 0
        %504 = vmatpush1.bf16.msra.mxu0 %v481
        %505 = vmatprep.subr.bf16.mxu0 0
        %506 = vmatpush1.bf16.msra.mxu0 %v482
        %507 = vmatprep.subr.bf16.mxu0 0
        %508 = vmatpush1.bf16.msra.mxu0 0
        %509 = vmatprep.subr.bf16.mxu0 0
        %510 = vmatpush1.bf16.msra.mxu0 0
        %511 = vmatprep.subr.bf16.mxu0 0
        %512 = vmatpush1.bf16.msra.mxu0 0
        %513 = vmatprep.subr.bf16.mxu0 0
        %514 = vmatpush1.bf16.msra.mxu0 0
        %515 = vmatprep.subr.bf16.mxu0 0
        %516 = vmatpush1.bf16.msra.mxu0 0
        %517 = vmatprep.subr.bf16.mxu0 0
        %518 = vmatpush1.bf16.msra.mxu0 0
        %519 = vmatprep.subr.bf16.mxu0 0
        %520 = vmatpush1.bf16.msra.mxu0 0
        %521 = vmatprep.subr.bf16.mxu0 0
        %522 = vmatpush1.bf16.msra.mxu0 0
        %523 = vmatprep.mubr.bf16.mxu0 0
        %524 = vmatmul.mubr.bf16.gmra.mrb[0].mxu0 %v435
        %v525 = vpop.f32.mrb[0].mxu0
        %v526 = vadd.f32 0.0, %v525
        %v527 = vpop.f32.mrb[0].mxu0
        %v528 = vpop.f32.mrb[0].mxu0
        %v529 = vadd.f32 0.0, %v528
        %v530 = vpop.f32.mrb[0].mxu0
        %531 = vmatprep.mubr.bf16.mxu0 0
        %532 = vmatmul.mubr.bf16.gmra.mrb[0].mxu0 %v436
        %v533 = vpop.f32.mrb[0].mxu0
        %v534 = vadd.f32 0.0, %v533
        %v535 = vpop.f32.mrb[0].mxu0
        %v536 = vpop.f32.mrb[0].mxu0
        %v537 = vadd.f32 0.0, %v536
        %v538 = vpop.f32.mrb[0].mxu0
        %539 = vmatprep.mubr.bf16.mxu0 0
        %540 = vmatmul.mubr.bf16.gmra.mrb[0].mxu0 %v437
        %v541 = vpop.f32.mrb[0].mxu0
        %v542 = vadd.f32 0.0, %v541
        %v543 = vpop.f32.mrb[0].mxu0
        %v544 = vpop.f32.mrb[0].mxu0
        %v545 = vadd.f32 0.0, %v544
        %v546 = vpop.f32.mrb[0].mxu0
        %547 = vmatprep.mubr.bf16.mxu0 0
        %548 = vmatmul.mubr.bf16.gmra.mrb[0].mxu0 %v438
        %v549 = vpop.f32.mrb[0].mxu0
        %v550 = vadd.f32 0.0, %v549
        %v551 = vpop.f32.mrb[0].mxu0
        %v552 = vpop.f32.mrb[0].mxu0
        %v553 = vadd.f32 0.0, %v552
        %v554 = vpop.f32.mrb[0].mxu0
        %555 = vdwg.mxu0
        %v557 = vlaneseq
        %v558 = vshrl.u32 %v557, 7
        %v559 = vsub.s32 0, %v558
        %v560 = vrot.slane %v409, %v559
        %v562 = vmul.f32 %v526, %v560
        %v563 = vmul.f32 %v529, %v560
        %v564 = vmul.f32 %v534, %v560
        %v565 = vmul.f32 %v537, %v560
        %v566 = vmul.f32 %v542, %v560
        %v567 = vmul.f32 %v545, %v560
        %v568 = vmul.f32 %v550, %v560
        %v569 = vmul.f32 %v553, %v560
        %v571 = vlaneseq
        %v572 = vshrl.u32 %v571, 7
        %v573 = vsub.s32 0, %v572
        %v574 = vrot.slane %v410, %v573
        %v576 = vadd.f32 %v562, %v574
        %v577 = vadd.f32 %v563, %v574
        %v578 = vadd.f32 %v564, %v574
        %v579 = vadd.f32 %v565, %v574
        %v580 = vadd.f32 %v566, %v574
        %v581 = vadd.f32 %v567, %v574
        %v582 = vadd.f32 %v568, %v574
        %v583 = vadd.f32 %v569, %v574
        %v584 = vmax.f32 %v576, 0.0
        %v585 = vmax.f32 %v577, 0.0
        %v586 = vmax.f32 %v578, 0.0
        %v587 = vmax.f32 %v579, 0.0
        %v588 = vmax.f32 %v580, 0.0
        %v589 = vmax.f32 %v581, 0.0
        %v590 = vmax.f32 %v582, 0.0
        %v591 = vmax.f32 %v583, 0.0
        %s592 = scalar_lea.vmem %s354, 32 [#allocation2]
        %v593 = vld [vmem:[%s592] sm:$0xf]
        %v594 = vld [vmem:[%s592 + $0x4] sm:$0xf]
        %v595 = vld [vmem:[%s592 + $0x8] sm:$0xf]
        %v596 = vld [vmem:[%s592 + $0xc] sm:$0xf]
        %v597 = vld [vmem:[%s592 + $0x10] sm:$0xf]
        %v598 = vld [vmem:[%s592 + $0x14] sm:$0xf]
        %v599 = vld [vmem:[%s592 + $0x18] sm:$0xf]
        %v600 = vld [vmem:[%s592 + $0x1c] sm:$0xf]
        %v609 = vunpack.c.l.b16 %v593
        %v610 = vunpack.c.l.b16 %v594
        %v611 = vunpack.c.l.b16 %v595
        %v612 = vunpack.c.l.b16 %v596
        %v613 = vunpack.c.l.b16 %v597
        %v614 = vunpack.c.l.b16 %v598
        %v615 = vunpack.c.l.b16 %v599
        %v616 = vunpack.c.l.b16 %v600
        %v617 = vpack.c.b16 %v610, %v609
        %v618 = vpack.c.b16 %v612, %v611
        %v619 = vpack.c.b16 %v614, %v613
        %v620 = vpack.c.b16 %v616, %v615
        %625 = vmatprep.subr.bf16.mxu0 0
        %626 = vmatpush1.bf16.msra.mxu0 %v475
        %627 = vmatprep.subr.bf16.mxu0 0
        %628 = vmatpush1.bf16.msra.mxu0 %v476
        %629 = vmatprep.subr.bf16.mxu0 0
        %630 = vmatpush1.bf16.msra.mxu0 %v477
        %631 = vmatprep.subr.bf16.mxu0 0
        %632 = vmatpush1.bf16.msra.mxu0 %v478
        %633 = vmatprep.subr.bf16.mxu0 0
        %634 = vmatpush1.bf16.msra.mxu0 %v479
        %635 = vmatprep.subr.bf16.mxu0 0
        %636 = vmatpush1.bf16.msra.mxu0 %v480
        %637 = vmatprep.subr.bf16.mxu0 0
        %638 = vmatpush1.bf16.msra.mxu0 %v481
        %639 = vmatprep.subr.bf16.mxu0 0
        %640 = vmatpush1.bf16.msra.mxu0 %v482
        %641 = vmatprep.subr.bf16.mxu0 0
        %642 = vmatpush1.bf16.msra.mxu0 0
        %643 = vmatprep.subr.bf16.mxu0 0
        %644 = vmatpush1.bf16.msra.mxu0 0
        %645 = vmatprep.subr.bf16.mxu0 0
        %646 = vmatpush1.bf16.msra.mxu0 0
        %647 = vmatprep.subr.bf16.mxu0 0
        %648 = vmatpush1.bf16.msra.mxu0 0
        %649 = vmatprep.subr.bf16.mxu0 0
        %650 = vmatpush1.bf16.msra.mxu0 0
        %651 = vmatprep.subr.bf16.mxu0 0
        %652 = vmatpush1.bf16.msra.mxu0 0
        %653 = vmatprep.subr.bf16.mxu0 0
        %654 = vmatpush1.bf16.msra.mxu0 0
        %655 = vmatprep.subr.bf16.mxu0 0
        %656 = vmatpush1.bf16.msra.mxu0 0
        %657 = vmatprep.mubr.bf16.mxu0 0
        %658 = vmatmul.mubr.bf16.gmra.mrb[0].mxu0 %v617
        %v659 = vpop.f32.mrb[0].mxu0
        %v660 = vadd.f32 0.0, %v659
        %v661 = vpop.f32.mrb[0].mxu0
        %v662 = vpop.f32.mrb[0].mxu0
        %v663 = vadd.f32 0.0, %v662
        %v664 = vpop.f32.mrb[0].mxu0
        %665 = vmatprep.mubr.bf16.mxu0 0
        %666 = vmatmul.mubr.bf16.gmra.mrb[0].mxu0 %v618
        %v667 = vpop.f32.mrb[0].mxu0
        %v668 = vadd.f32 0.0, %v667
        %v669 = vpop.f32.mrb[0].mxu0
        %v670 = vpop.f32.mrb[0].mxu0
        %v671 = vadd.f32 0.0, %v670
        %v672 = vpop.f32.mrb[0].mxu0
        %673 = vmatprep.mubr.bf16.mxu0 0
        %674 = vmatmul.mubr.bf16.gmra.mrb[0].mxu0 %v619
        %v675 = vpop.f32.mrb[0].mxu0
        %v676 = vadd.f32 0.0, %v675
        %v677 = vpop.f32.mrb[0].mxu0
        %v678 = vpop.f32.mrb[0].mxu0
        %v679 = vadd.f32 0.0, %v678
        %v680 = vpop.f32.mrb[0].mxu0
        %681 = vmatprep.mubr.bf16.mxu0 0
        %682 = vmatmul.mubr.bf16.gmra.mrb[0].mxu0 %v620
        %v683 = vpop.f32.mrb[0].mxu0
        %v684 = vadd.f32 0.0, %v683
        %v685 = vpop.f32.mrb[0].mxu0
        %v686 = vpop.f32.mrb[0].mxu0
        %v687 = vadd.f32 0.0, %v686
        %v688 = vpop.f32.mrb[0].mxu0
        %689 = vdwg.mxu0
        %v690 = vmul.f32 %v660, %v560
        %v691 = vmul.f32 %v663, %v560
        %v692 = vmul.f32 %v668, %v560
        %v693 = vmul.f32 %v671, %v560
        %v694 = vmul.f32 %v676, %v560
        %v695 = vmul.f32 %v679, %v560
        %v696 = vmul.f32 %v684, %v560
        %v697 = vmul.f32 %v687, %v560
        %v698 = vadd.f32 %v690, %v574
        %v699 = vadd.f32 %v691, %v574
        %v700 = vadd.f32 %v692, %v574
        %v701 = vadd.f32 %v693, %v574
        %v702 = vadd.f32 %v694, %v574
        %v703 = vadd.f32 %v695, %v574
        %v704 = vadd.f32 %v696, %v574
        %v705 = vadd.f32 %v697, %v574
        %v706 = vmax.f32 %v698, 0.0
        %v707 = vmax.f32 %v699, 0.0
        %v708 = vmax.f32 %v700, 0.0
        %v709 = vmax.f32 %v701, 0.0
        %v710 = vmax.f32 %v702, 0.0
        %v711 = vmax.f32 %v703, 0.0
        %v712 = vmax.f32 %v704, 0.0
        %v713 = vmax.f32 %v705, 0.0
        %v714 = vmax.f32 %v584, %v706
        %v715 = vmax.f32 %v585, %v707
        %v716 = vmax.f32 %v586, %v708
        %v717 = vmax.f32 %v587, %v709
        %v718 = vmax.f32 %v588, %v710
        %v719 = vmax.f32 %v589, %v711
        %v720 = vmax.f32 %v590, %v712
        %v721 = vmax.f32 %v591, %v713
        %s722 = scalar_lea.vmem %s354, 64 [#allocation2]
        %v723 = vld [vmem:[%s722] sm:$0xf]
        %v724 = vld [vmem:[%s722 + $0x4] sm:$0xf]
        %v725 = vld [vmem:[%s722 + $0x8] sm:$0xf]
        %v726 = vld [vmem:[%s722 + $0xc] sm:$0xf]
        %v727 = vld [vmem:[%s722 + $0x10] sm:$0xf]
        %v728 = vld [vmem:[%s722 + $0x14] sm:$0xf]
        %v729 = vld [vmem:[%s722 + $0x18] sm:$0xf]
        %v730 = vld [vmem:[%s722 + $0x1c] sm:$0xf]
        %v739 = vunpack.c.l.b16 %v723
        %v740 = vunpack.c.l.b16 %v724
        %v741 = vunpack.c.l.b16 %v725
        %v742 = vunpack.c.l.b16 %v726
        %v743 = vunpack.c.l.b16 %v727
        %v744 = vunpack.c.l.b16 %v728
        %v745 = vunpack.c.l.b16 %v729
        %v746 = vunpack.c.l.b16 %v730
        %v747 = vpack.c.b16 %v740, %v739
        %v748 = vpack.c.b16 %v742, %v741
        %v749 = vpack.c.b16 %v744, %v743
        %v750 = vpack.c.b16 %v746, %v745
        %755 = vmatprep.subr.bf16.mxu0 0
        %756 = vmatpush1.bf16.msra.mxu0 %v475
        %757 = vmatprep.subr.bf16.mxu0 0
        %758 = vmatpush1.bf16.msra.mxu0 %v476
        %759 = vmatprep.subr.bf16.mxu0 0
        %760 = vmatpush1.bf16.msra.mxu0 %v477
        %761 = vmatprep.subr.bf16.mxu0 0
        %762 = vmatpush1.bf16.msra.mxu0 %v478
        %763 = vmatprep.subr.bf16.mxu0 0
        %764 = vmatpush1.bf16.msra.mxu0 %v479
        %765 = vmatprep.subr.bf16.mxu0 0
        %766 = vmatpush1.bf16.msra.mxu0 %v480
        %767 = vmatprep.subr.bf16.mxu0 0
        %768 = vmatpush1.bf16.msra.mxu0 %v481
        %769 = vmatprep.subr.bf16.mxu0 0
        %770 = vmatpush1.bf16.msra.mxu0 %v482
        %771 = vmatprep.subr.bf16.mxu0 0
        %772 = vmatpush1.bf16.msra.mxu0 0
        %773 = vmatprep.subr.bf16.mxu0 0
        %774 = vmatpush1.bf16.msra.mxu0 0
        %775 = vmatprep.subr.bf16.mxu0 0
        %776 = vmatpush1.bf16.msra.mxu0 0
        %777 = vmatprep.subr.bf16.mxu0 0
        %778 = vmatpush1.bf16.msra.mxu0 0
        %779 = vmatprep.subr.bf16.mxu0 0
        %780 = vmatpush1.bf16.msra.mxu0 0
        %781 = vmatprep.subr.bf16.mxu0 0
        %782 = vmatpush1.bf16.msra.mxu0 0
        %783 = vmatprep.subr.bf16.mxu0 0
        %784 = vmatpush1.bf16.msra.mxu0 0
        %785 = vmatprep.subr.bf16.mxu0 0
        %786 = vmatpush1.bf16.msra.mxu0 0
        %787 = vmatprep.mubr.bf16.mxu0 0
        %788 = vmatmul.mubr.bf16.gmra.mrb[0].mxu0 %v747
        %v789 = vpop.f32.mrb[0].mxu0
        %v790 = vadd.f32 0.0, %v789
        %v791 = vpop.f32.mrb[0].mxu0
        %v792 = vpop.f32.mrb[0].mxu0
        %v793 = vadd.f32 0.0, %v792
        %v794 = vpop.f32.mrb[0].mxu0
        %795 = vmatprep.mubr.bf16.mxu0 0
        %796 = vmatmul.mubr.bf16.gmra.mrb[0].mxu0 %v748
        %v797 = vpop.f32.mrb[0].mxu0
        %v798 = vadd.f32 0.0, %v797
        %v799 = vpop.f32.mrb[0].mxu0
        %v800 = vpop.f32.mrb[0].mxu0
        %v801 = vadd.f32 0.0, %v800
        %v802 = vpop.f32.mrb[0].mxu0
        %803 = vmatprep.mubr.bf16.mxu0 0
        %804 = vmatmul.mubr.bf16.gmra.mrb[0].mxu0 %v749
        %v805 = vpop.f32.mrb[0].mxu0
        %v806 = vadd.f32 0.0, %v805
        %v807 = vpop.f32.mrb[0].mxu0
        %v808 = vpop.f32.mrb[0].mxu0
        %v809 = vadd.f32 0.0, %v808
        %v810 = vpop.f32.mrb[0].mxu0
        %811 = vmatprep.mubr.bf16.mxu0 0
        %812 = vmatmul.mubr.bf16.gmra.mrb[0].mxu0 %v750
        %v813 = vpop.f32.mrb[0].mxu0
        %v814 = vadd.f32 0.0, %v813
        %v815 = vpop.f32.mrb[0].mxu0
        %v816 = vpop.f32.mrb[0].mxu0
        %v817 = vadd.f32 0.0, %v816
        %v818 = vpop.f32.mrb[0].mxu0
        %819 = vdwg.mxu0
        %v820 = vmul.f32 %v790, %v560
        %v821 = vmul.f32 %v793, %v560
        %v822 = vmul.f32 %v798, %v560
        %v823 = vmul.f32 %v801, %v560
        %v824 = vmul.f32 %v806, %v560
        %v825 = vmul.f32 %v809, %v560
        %v826 = vmul.f32 %v814, %v560
        %v827 = vmul.f32 %v817, %v560
        %v828 = vadd.f32 %v820, %v574
        %v829 = vadd.f32 %v821, %v574
        %v830 = vadd.f32 %v822, %v574
        %v831 = vadd.f32 %v823, %v574
        %v832 = vadd.f32 %v824, %v574
        %v833 = vadd.f32 %v825, %v574
        %v834 = vadd.f32 %v826, %v574
        %v835 = vadd.f32 %v827, %v574
        %v836 = vmax.f32 %v828, 0.0
        %v837 = vmax.f32 %v829, 0.0
        %v838 = vmax.f32 %v830, 0.0
        %v839 = vmax.f32 %v831, 0.0
        %v840 = vmax.f32 %v832, 0.0
        %v841 = vmax.f32 %v833, 0.0
        %v842 = vmax.f32 %v834, 0.0
        %v843 = vmax.f32 %v835, 0.0
        %v844 = vmax.f32 %v714, %v836
        %v845 = vmax.f32 %v715, %v837
        %v846 = vmax.f32 %v716, %v838
        %v847 = vmax.f32 %v717, %v839
        %v848 = vmax.f32 %v718, %v840
        %v849 = vmax.f32 %v719, %v841
        %v850 = vmax.f32 %v720, %v842
        %v851 = vmax.f32 %v721, %v843
        %s852 = scalar_lea.vmem %s354, 96 [#allocation2]
        %v853 = vld [vmem:[%s852] sm:$0xf]
        %v854 = vld [vmem:[%s852 + $0x4] sm:$0xf]
        %v855 = vld [vmem:[%s852 + $0x8] sm:$0xf]
        %v856 = vld [vmem:[%s852 + $0xc] sm:$0xf]
        %v857 = vld [vmem:[%s852 + $0x10] sm:$0xf]
        %v858 = vld [vmem:[%s852 + $0x14] sm:$0xf]
        %v859 = vld [vmem:[%s852 + $0x18] sm:$0xf]
        %v860 = vld [vmem:[%s852 + $0x1c] sm:$0xf]
        %v869 = vunpack.c.l.b16 %v853
        %v870 = vunpack.c.l.b16 %v854
        %v871 = vunpack.c.l.b16 %v855
        %v872 = vunpack.c.l.b16 %v856
        %v873 = vunpack.c.l.b16 %v857
        %v874 = vunpack.c.l.b16 %v858
        %v875 = vunpack.c.l.b16 %v859
        %v876 = vunpack.c.l.b16 %v860
        %v877 = vpack.c.b16 %v870, %v869
        %v878 = vpack.c.b16 %v872, %v871
        %v879 = vpack.c.b16 %v874, %v873
        %v880 = vpack.c.b16 %v876, %v875
        %885 = vmatprep.subr.bf16.mxu0 0
        %886 = vmatpush1.bf16.msra.mxu0 %v475
        %887 = vmatprep.subr.bf16.mxu0 0
        %888 = vmatpush1.bf16.msra.mxu0 %v476
        %889 = vmatprep.subr.bf16.mxu0 0
        %890 = vmatpush1.bf16.msra.mxu0 %v477
        %891 = vmatprep.subr.bf16.mxu0 0
        %892 = vmatpush1.bf16.msra.mxu0 %v478
        %893 = vmatprep.subr.bf16.mxu0 0
        %894 = vmatpush1.bf16.msra.mxu0 %v479
        %895 = vmatprep.subr.bf16.mxu0 0
        %896 = vmatpush1.bf16.msra.mxu0 %v480
        %897 = vmatprep.subr.bf16.mxu0 0
        %898 = vmatpush1.bf16.msra.mxu0 %v481
        %899 = vmatprep.subr.bf16.mxu0 0
        %900 = vmatpush1.bf16.msra.mxu0 %v482
        %901 = vmatprep.subr.bf16.mxu0 0
        %902 = vmatpush1.bf16.msra.mxu0 0
        %903 = vmatprep.subr.bf16.mxu0 0
        %904 = vmatpush1.bf16.msra.mxu0 0
        %905 = vmatprep.subr.bf16.mxu0 0
        %906 = vmatpush1.bf16.msra.mxu0 0
        %907 = vmatprep.subr.bf16.mxu0 0
        %908 = vmatpush1.bf16.msra.mxu0 0
        %909 = vmatprep.subr.bf16.mxu0 0
        %910 = vmatpush1.bf16.msra.mxu0 0
        %911 = vmatprep.subr.bf16.mxu0 0
        %912 = vmatpush1.bf16.msra.mxu0 0
        %913 = vmatprep.subr.bf16.mxu0 0
        %914 = vmatpush1.bf16.msra.mxu0 0
        %915 = vmatprep.subr.bf16.mxu0 0
        %916 = vmatpush1.bf16.msra.mxu0 0
        %917 = vmatprep.mubr.bf16.mxu0 0
        %918 = vmatmul.mubr.bf16.gmra.mrb[0].mxu0 %v877
        %v919 = vpop.f32.mrb[0].mxu0
        %v920 = vadd.f32 0.0, %v919
        %v921 = vpop.f32.mrb[0].mxu0
        %v922 = vpop.f32.mrb[0].mxu0
        %v923 = vadd.f32 0.0, %v922
        %v924 = vpop.f32.mrb[0].mxu0
        %925 = vmatprep.mubr.bf16.mxu0 0
        %926 = vmatmul.mubr.bf16.gmra.mrb[0].mxu0 %v878
        %v927 = vpop.f32.mrb[0].mxu0
        %v928 = vadd.f32 0.0, %v927
        %v929 = vpop.f32.mrb[0].mxu0
        %v930 = vpop.f32.mrb[0].mxu0
        %v931 = vadd.f32 0.0, %v930
        %v932 = vpop.f32.mrb[0].mxu0
        %933 = vmatprep.mubr.bf16.mxu0 0
        %934 = vmatmul.mubr.bf16.gmra.mrb[0].mxu0 %v879
        %v935 = vpop.f32.mrb[0].mxu0
        %v936 = vadd.f32 0.0, %v935
        %v937 = vpop.f32.mrb[0].mxu0
        %v938 = vpop.f32.mrb[0].mxu0
        %v939 = vadd.f32 0.0, %v938
        %v940 = vpop.f32.mrb[0].mxu0
        %941 = vmatprep.mubr.bf16.mxu0 0
        %942 = vmatmul.mubr.bf16.gmra.mrb[0].mxu0 %v880
        %v943 = vpop.f32.mrb[0].mxu0
        %v944 = vadd.f32 0.0, %v943
        %v945 = vpop.f32.mrb[0].mxu0
        %v946 = vpop.f32.mrb[0].mxu0
        %v947 = vadd.f32 0.0, %v946
        %v948 = vpop.f32.mrb[0].mxu0
        %949 = vdwg.mxu0
        %v950 = vmul.f32 %v920, %v560
        %v951 = vmul.f32 %v923, %v560
        %v952 = vmul.f32 %v928, %v560
        %v953 = vmul.f32 %v931, %v560
        %v954 = vmul.f32 %v936, %v560
        %v955 = vmul.f32 %v939, %v560
        %v956 = vmul.f32 %v944, %v560
        %v957 = vmul.f32 %v947, %v560
        %v958 = vadd.f32 %v950, %v574
        %v959 = vadd.f32 %v951, %v574
        %v960 = vadd.f32 %v952, %v574
        %v961 = vadd.f32 %v953, %v574
        %v962 = vadd.f32 %v954, %v574
        %v963 = vadd.f32 %v955, %v574
        %v964 = vadd.f32 %v956, %v574
        %v965 = vadd.f32 %v957, %v574
        %v966 = vmax.f32 %v958, 0.0
        %v967 = vmax.f32 %v959, 0.0
        %v968 = vmax.f32 %v960, 0.0
        %v969 = vmax.f32 %v961, 0.0
        %v970 = vmax.f32 %v962, 0.0
        %v971 = vmax.f32 %v963, 0.0
        %v972 = vmax.f32 %v964, 0.0
        %v973 = vmax.f32 %v965, 0.0
        %v974 = vmax.f32 %v844, %v966
        %v975 = vmax.f32 %v845, %v967
        %v976 = vmax.f32 %v846, %v968
        %v977 = vmax.f32 %v847, %v969
        %v978 = vmax.f32 %v848, %v970
        %v979 = vmax.f32 %v849, %v971
        %v980 = vmax.f32 %v850, %v972
        %v981 = vmax.f32 %v851, %v973
        %v982 = vpack.c.bf16 %v975, %v974
        %v983 = vpack.c.bf16 %v977, %v976
        %v984 = vpack.c.bf16 %v979, %v978
        %v985 = vpack.c.bf16 %v981, %v980
        %v990 = vunpack.c.l.b16 %v982
        %v991 = vunpack.c.h.b16 %v982
        %v992 = vunpack.c.l.b16 %v983
        %v993 = vunpack.c.h.b16 %v983
        %v994 = vunpack.c.l.b16 %v984
        %v995 = vunpack.c.h.b16 %v984
        %v996 = vunpack.c.l.b16 %v985
        %v997 = vunpack.c.h.b16 %v985
        %v998 = vpack.c.b16 %v990, %v990
        %v999 = vpack.c.b16 %v991, %v991
        %v1000 = vpack.c.b16 %v992, %v992
        %v1001 = vpack.c.b16 %v993, %v993
        %v1002 = vpack.c.b16 %v994, %v994
        %v1003 = vpack.c.b16 %v995, %v995
        %v1004 = vpack.c.b16 %v996, %v996
        %v1005 = vpack.c.b16 %v997, %v997
        %1014 = vst [vmem:[%s390] sm:$0xf] %v998
        %1015 = vst [vmem:[%s390 + $0x4] sm:$0xf] %v999
        %1016 = vst [vmem:[%s390 + $0x8] sm:$0xf] %v1000
        %1017 = vst [vmem:[%s390 + $0xc] sm:$0xf] %v1001
        %1018 = vst [vmem:[%s390 + $0x10] sm:$0xf] %v1002
        %1019 = vst [vmem:[%s390 + $0x14] sm:$0xf] %v1003
        %1020 = vst [vmem:[%s390 + $0x18] sm:$0xf] %v1004
        %1021 = vst [vmem:[%s390 + $0x1c] sm:$0xf] %v1005
        %s1022 = smul.u32 8, %s20
        %p1023 = scmp.lt.s32.totalorder %s19, 1
        %s1024 = scalar_select %p1023, %s19, 1
        %p1025 = scmp.lt.s32.totalorder %s1022, 15
        %s1026 = scalar_select %p1025, %s1022, 15
        %s1027 = smul.addr %s1024, 16
        %s1028 = sadd.s32 %s1026, %s1027
        %s1029 = smul.addr %s1028, 4
        %s1030 = scalar_lea.vmem %s4, %s1029
        // Predicated region
        $region78: #{conv1d_bn_relu_maxpool.1} parent=72 // pred_check
          %p1031 = pneg %p138
        $region79: #{conv1d_bn_relu_maxpool.1} parent=72 // pred_check_branch
          %1033 = sbr.rel (%p1031) target = $region81
        $region80: #{conv1d_bn_relu_maxpool.1} parent=72 // pred_region
          %s1034 = smul.u32 8, %s20
        $region81: #{conv1d_bn_relu_maxpool.1} parent=72 // pred_fallthru
          _
      $region73: #{conv1d_bn_relu_maxpool.1} parent=5 // pred_fallthru
        _
      %p1035 = scmp.le.s32.totalorder 2, %s10
      // Predicated region
      $region82: #{conv1d_bn_relu_maxpool.1} parent=5 // pred_check
        %p1036 = pneg %p1035
      $region83: #{conv1d_bn_relu_maxpool.1} parent=5 // pred_check_branch
        %1038 = sbr.rel (%p1036) target = $region85
      $region84: #{conv1d_bn_relu_maxpool.1} parent=5 // pred_region
        %s1039 = ssub.s32 %s10, 2
        // Predicated region
        $region86: #{conv1d_bn_relu_maxpool.1} parent=84 // pred_check
          %p1040 = pneg %p144
        $region87: #{conv1d_bn_relu_maxpool.1} parent=84 // pred_check_branch
          %1042 = sbr.rel (%p1040) target = $region89
        $region88: #{conv1d_bn_relu_maxpool.1} parent=84 // pred_region
          %s1043 = smul.u32 8, %s22
          %p1044 = scmp.lt.s32.totalorder %s21, 1
          %s1045 = scalar_select %p1044, %s21, 1
          %p1046 = scmp.lt.s32.totalorder %s1043, 15
          %s1047 = scalar_select %p1046, %s1043, 15
          %s1048 = smul.addr %s1045, 16
          %s1049 = sadd.s32 %s1047, %s1048
          %s1050 = smul.addr %s1049, 4
          %s1051 = scalar_lea.vmem %s4, %s1050
        $region89: #{conv1d_bn_relu_maxpool.1} parent=84 // pred_fallthru
          _
      $region85: #{conv1d_bn_relu_maxpool.1} parent=5 // pred_fallthru
        _
    $region6: #{conv1d_bn_relu_maxpool.1} parent=1 // loop_footer
      %s14 = sadd.s32 1, %s10
    $region7: #{conv1d_bn_relu_maxpool.1} parent=1 // loop_footer_branch
      %9 = sbr.rel target = $region3
    $region8: #{conv1d_bn_relu_maxpool.1} parent=1 // loop_exit
      _

</llo_original>
